<compile_context>
chip_gen: v7x
topology: tpu7x:2x2x1
jax: 0.10.0
libtpu: 0.0.40
codegen_flags: <defaults>
</compile_context>

<pallas_src>
import functools

import jax
import jax.numpy as jnp
from jax.experimental import pallas as pl
from jax.experimental.pallas import tpu as pltpu

HIDDEN1 = 128
HIDDEN2 = 256


def _round_up(x, m):
    return ((x + m - 1) // m) * m


def _default_l1_on_mxu():
    """bf16 layer-1-on-MXU + bf16 epilogues is the fast path on v6e/v7x
    (bf16 VALU, big MXU slack).  v5e and older keep layer 1 as f32 VPU MACs
    (no bf16 VALU; the MXU is already the busier unit there)."""
    try:
        kind = jax.devices()[0].device_kind.lower()
    except Exception:
        return True
    for tag in ("v2", "v3", "v4", "v5 lite", "v5lite", "v5e"):
        if tag in kind:
            return False
    return True


def _index_decoder_kernel(x_ref, w1_ref, b1_ref, w2_ref, b2_ref,
                          w3_ref, b3_ref, o_ref, *, l1_on_mxu):
    # Layout (channels on sublanes, pixels on lanes):
    #   x_ref : (Cin, T)    f32
    #   w1    : (H1, Cin)   bf16 (MXU path) / f32 (VPU path)
    #   w2    : (H2, H1)    bf16
    #   w3    : (Cout, H2)  bf16
    #   b*    : (C, 1)      f32
    #   o_ref : (Cout, T)   f32  -> lane-dense stores
    x = x_ref[...]

    if l1_on_mxu:
        # Layer 1 on the MXU (plenty of slack on v6e/v7x even with the padded
        # contraction depth); epilogues in bf16 so the VALU works on 16x128
        # vregs and h1/h2 never materialize in f32.
        h1 = jnp.dot(w1_ref[...], x.astype(jnp.bfloat16),
                     preferred_element_type=jnp.float32)
        h1 = jnp.maximum(h1.astype(jnp.bfloat16)
                         + b1_ref[...].astype(jnp.bfloat16), 0.0)
        h2 = jnp.dot(w2_ref[...], h1, preferred_element_type=jnp.float32)
        h2 = jnp.maximum(h2.astype(jnp.bfloat16)
                         + b2_ref[...].astype(jnp.bfloat16), 0.0)
    else:
        # v5e fallback: layer 1 as unrolled f32 broadcast MACs on the VPU.
        T = x.shape[-1]
        w1 = w1_ref[...]
        h1 = jnp.broadcast_to(b1_ref[...], (w1.shape[0], T))
        for c in range(x.shape[0]):              # Cin is tiny -> static unroll
            h1 = h1 + w1[:, c:c + 1] * x[c:c + 1, :]
        h1 = jnp.maximum(h1, 0.0).astype(jnp.bfloat16)
        h2 = jnp.dot(w2_ref[...], h1, preferred_element_type=jnp.float32)
        h2 = jnp.maximum(h2 + b2_ref[...], 0.0).astype(jnp.bfloat16)

    out = jnp.dot(w3_ref[...], h2,
                  preferred_element_type=jnp.float32) + b3_ref[...]
    o_ref[...] = out.astype(o_ref.dtype)


def index_decoder_pallas(x_nchw, params, *, tile=8192, l1_on_mxu=None):
    """x_nchw: (N, Cin, H, W) float32. Returns (N, Cout, H, W) float32."""
    if l1_on_mxu is None:
        l1_on_mxu = _default_l1_on_mxu()

    w1, b1, w2, b2, w3, b3 = params          # w: (out, in) f32, b: (out, 1) f32
    N, Cin, H, W = x_nchw.shape
    Cout = w3.shape[0]
    HW = H * W

    # MXU weights in bf16 (layer-1 weights only on the MXU path).
    w1k = w1.astype(jnp.bfloat16) if l1_on_mxu else w1
    w2k = w2.astype(jnp.bfloat16)
    w3k = w3.astype(jnp.bfloat16)

    kernel = functools.partial(_index_decoder_kernel, l1_on_mxu=l1_on_mxu)

    def vmem_limit(t):
        # double-buffered I/O tiles + f32 accumulators + bf16 copies + headroom;
        # cap well inside v7x's 64 MiB per-TC VMEM.
        io = 2 * (Cin + Cout) * 4 * t
        inter = (HIDDEN1 + HIDDEN2) * (4 + 2) * t
        est = int((io + inter) * 1.25) + (4 << 20)
        return max(32 << 20, min(est, 64 << 20))

    fold = HW < tile     # small images: fold batch into the lane axis

    if fold:
        # (N, Cin, HW) -> (Cin, N*HW): one lane-dense slab instead of one tiny
        # grid step per image (transpose cost is negligible at these sizes).
        P = N * HW
        x2 = jnp.transpose(x_nchw.reshape(N, Cin, HW), (1, 0, 2)).reshape(Cin, P)
        t = min(tile, _round_up(P, 128))
        t = max(128, (t // 128) * 128)
        if P > 128 and pl.cdiv(P, t) < 2:     # give both v7x TensorCores work
            t = max(128, _round_up(pl.cdiv(P, 2), 128))
        grid = (pl.cdiv(P, t),)               # ragged tail = partial block

        out2 = pl.pallas_call(
            kernel,
            out_shape=jax.ShapeDtypeStruct((Cout, P), jnp.float32),
            grid_spec=pltpu.PrefetchScalarGridSpec(
                num_scalar_prefetch=0,
                grid=grid,
                in_specs=[
                    pl.BlockSpec((Cin, t), lambda j: (0, j)),
                    pl.BlockSpec((HIDDEN1, Cin), lambda j: (0, 0)),
                    pl.BlockSpec((HIDDEN1, 1), lambda j: (0, 0)),
                    pl.BlockSpec((HIDDEN2, HIDDEN1), lambda j: (0, 0)),
                    pl.BlockSpec((HIDDEN2, 1), lambda j: (0, 0)),
                    pl.BlockSpec((Cout, HIDDEN2), lambda j: (0, 0)),
                    pl.BlockSpec((Cout, 1), lambda j: (0, 0)),
                ],
                out_specs=pl.BlockSpec((Cout, t), lambda j: (0, j)),
            ),
            compiler_params=pltpu.CompilerParams(
                dimension_semantics=("parallel",),
                vmem_limit_bytes=vmem_limit(t)),
        )(x2, w1k, b1, w2k, b2, w3k, b3)
        out = jnp.transpose(out2.reshape(Cout, N, HW), (1, 0, 2))
        return out.reshape(N, Cout, H, W)

    # Large images: keep NCHW as a pure reshape (no transpose, no extra HBM
    # pass) and tile pixels per image.  No padding / output slice: the ragged
    # tail is a partial block (only the valid region is written back).
    x_flat = x_nchw.reshape(N, Cin, HW)
    t = min(tile, _round_up(HW, 128))
    t = max(128, (t // 128) * 128)
    grid = (N, pl.cdiv(HW, t))

    out_flat = pl.pallas_call(
        kernel,
        out_shape=jax.ShapeDtypeStruct((N, Cout, HW), jnp.float32),
        grid_spec=pltpu.PrefetchScalarGridSpec(
            num_scalar_prefetch=0,
            grid=grid,
            in_specs=[
                pl.BlockSpec((pl.Squeezed(), Cin, t), lambda n, j: (n, 0, j)),
                pl.BlockSpec((HIDDEN1, Cin), lambda n, j: (0, 0)),
                pl.BlockSpec((HIDDEN1, 1), lambda n, j: (0, 0)),
                pl.BlockSpec((HIDDEN2, HIDDEN1), lambda n, j: (0, 0)),
                pl.BlockSpec((HIDDEN2, 1), lambda n, j: (0, 0)),
                pl.BlockSpec((Cout, HIDDEN2), lambda n, j: (0, 0)),
                pl.BlockSpec((Cout, 1), lambda n, j: (0, 0)),
            ],
            out_specs=pl.BlockSpec((pl.Squeezed(), Cout, t),
                                   lambda n, j: (n, 0, j)),
        ),
        compiler_params=pltpu.CompilerParams(
            dimension_semantics=("parallel", "parallel"),
            vmem_limit_bytes=vmem_limit(t)),
    )(x_flat, w1k, b1, w2k, b2, w3k, b3)
    return out_flat.reshape(N, Cout, H, W)


def init_params(key, input_channels, output_channels):
    """Deterministic init matching the PyTorch Conv2d(k=1) layers.
    Weights stored as (Cout, Cin) (= conv weight squeezed), biases as (Cout, 1)."""
    ks = jax.random.split(key, 6)

    def conv_init(wk, bk, cin, cout):
        # PyTorch Conv2d default init: U(-1/sqrt(fan_in), 1/sqrt(fan_in))
        bound = 1.0 / (cin ** 0.5)
        w = jax.random.uniform(wk, (cout, cin), jnp.float32, -bound, bound)
        b = jax.random.uniform(bk, (cout, 1), jnp.float32, -bound, bound)
        return w, b

    w1, b1 = conv_init(ks[0], ks[1], input_channels, HIDDEN1)
    w2, b2 = conv_init(ks[2], ks[3], HIDDEN1, HIDDEN2)
    w3, b3 = conv_init(ks[4], ks[5], HIDDEN2, output_channels)
    return (w1, b1, w2, b2, w3, b3)


def index_decoder_ref(x_nchw, params, l1_on_mxu=True):
    """Plain-JAX reference replicating the kernel's math (incl. bf16 rounding
    of MXU-layer inputs and the bf16 epilogues) for verification."""
    w1, b1, w2, b2, w3, b3 = params
    N, Cin, H, W = x_nchw.shape
    x = x_nchw.reshape(N, Cin, H * W)
    hi = jax.lax.Precision.HIGHEST
    f32, bf16 = jnp.float32, jnp.bfloat16
    w2b = w2.astype(bf16).astype(f32)
    w3b = w3.astype(bf16).astype(f32)
    if l1_on_mxu:
        h1 = jnp.einsum('oc,ncp->nop', w1.astype(bf16).astype(f32),
                        x.astype(bf16).astype(f32), precision=hi)
        h1 = jnp.maximum(h1.astype(bf16) + b1[None].astype(bf16), 0.0).astype(f32)
        h2 = jnp.einsum('oc,ncp->nop', w2b, h1, precision=hi)
        h2 = jnp.maximum(h2.astype(bf16) + b2[None].astype(bf16), 0.0).astype(f32)
    else:
        h1 = jnp.maximum(
            jnp.einsum('oc,ncp->nop', w1, x, precision=hi) + b1[None], 0.0)
        h1 = h1.astype(bf16).astype(f32)
        h2 = jnp.einsum('oc,ncp->nop', w2b, h1, precision=hi)
        h2 = jnp.maximum(h2 + b2[None], 0.0).astype(bf16).astype(f32)
    out = jnp.einsum('oc,ncp->nop', w3b, h2, precision=hi) + b3[None]
    return out.reshape(N, -1, H, W)


if __name__ == "__main__":
    key = jax.random.PRNGKey(0)
    k_x, k_p = jax.random.split(key)

    input_channels, output_channels = 4, 8
    x = jax.random.normal(k_x, (2, input_channels, 16, 16), jnp.float32)
    params = init_params(k_p, input_channels, output_channels)

    l1_on_mxu = _default_l1_on_mxu()
    out = index_decoder_pallas(x, params, l1_on_mxu=l1_on_mxu)
    out = jax.block_until_ready(out)

    ref = index_decoder_ref(x, params, l1_on_mxu=l1_on_mxu)
    assert out.shape == (2, output_channels, 16, 16), out.shape
    assert jnp.allclose(out, ref, atol=2e-3, rtol=2e-3), \
        float(jnp.max(jnp.abs(out - ref)))

    print("KERNEL_OK")
</pallas_src>

<mosaic_0001>
module attributes {stable_mosaic.version = 11 : i64} {
  func.func @_index_decoder_kernel(%arg0: i32, %arg1: memref<4x256xf32, #tpu.memory_space<vmem>>, %arg2: memref<128x4xbf16, #tpu.memory_space<vmem>>, %arg3: memref<128x1xf32, #tpu.memory_space<vmem>>, %arg4: memref<256x128xbf16, #tpu.memory_space<vmem>>, %arg5: memref<256x1xf32, #tpu.memory_space<vmem>>, %arg6: memref<8x256xbf16, #tpu.memory_space<vmem>>, %arg7: memref<8x1xf32, #tpu.memory_space<vmem>>, %arg8: memref<8x256xf32, #tpu.memory_space<vmem>>) attributes {dimension_semantics = [#tpu.dimension_semantics<parallel>], iteration_bounds = array<i64: 2>, scalar_prefetch = 0 : i64, scratch_operands = 0 : i64, tpu.core_type = #tpu.core_type<tc>, window_params = [{transform_indices = @transform_0, window_bounds = array<i64: 4, 256>}, {pipeline_mode = #tpu.pipeline_mode<synchronous>, transform_indices = @transform_1, window_bounds = array<i64: 128, 4>}, {pipeline_mode = #tpu.pipeline_mode<synchronous>, transform_indices = @transform_2, window_bounds = array<i64: 128, 1>}, {pipeline_mode = #tpu.pipeline_mode<synchronous>, transform_indices = @transform_3, window_bounds = array<i64: 256, 128>}, {pipeline_mode = #tpu.pipeline_mode<synchronous>, transform_indices = @transform_4, window_bounds = array<i64: 256, 1>}, {pipeline_mode = #tpu.pipeline_mode<synchronous>, transform_indices = @transform_5, window_bounds = array<i64: 8, 256>}, {pipeline_mode = #tpu.pipeline_mode<synchronous>, transform_indices = @transform_6, window_bounds = array<i64: 8, 1>}, {transform_indices = @transform_7, window_bounds = array<i64: 8, 256>}]} {
    %c0 = arith.constant 0 : index
    %c0_0 = arith.constant 0 : index
    %0 = vector.load %arg1[%c0, %c0_0] : memref<4x256xf32, #tpu.memory_space<vmem>>, vector<4x256xf32>
    %c0_1 = arith.constant 0 : index
    %c0_2 = arith.constant 0 : index
    %1 = vector.load %arg2[%c0_1, %c0_2] : memref<128x4xbf16, #tpu.memory_space<vmem>>, vector<128x4xbf16>
    %2 = arith.truncf %0 : vector<4x256xf32> to vector<4x256xbf16>
    %cst = arith.constant dense<0.000000e+00> : vector<128x256xf32>
    %3 = tpu.matmul %1, %2, %cst {dimension_numbers = #tpu.dot_dimension_numbers<[1], [0], [0], [1], [0, 0, 1, 1], [], []>} : vector<128x4xbf16>, vector<4x256xbf16>, vector<128x256xf32> -> vector<128x256xf32>
    %4 = arith.truncf %3 : vector<128x256xf32> to vector<128x256xbf16>
    %c0_3 = arith.constant 0 : index
    %c0_4 = arith.constant 0 : index
    %5 = vector.load %arg3[%c0_3, %c0_4] : memref<128x1xf32, #tpu.memory_space<vmem>>, vector<128x1xf32>
    %6 = arith.truncf %5 : vector<128x1xf32> to vector<128x1xbf16>
    %7 = vector.broadcast %6 : vector<128x1xbf16> to vector<128x256xbf16>
    %8 = arith.addf %4, %7 : vector<128x256xbf16>
    %cst_5 = arith.constant 0.000000e+00 : bf16
    %9 = vector.broadcast %cst_5 : bf16 to vector<128x256xbf16>
    %10 = arith.maximumf %8, %9 : vector<128x256xbf16>
    %c0_6 = arith.constant 0 : index
    %c0_7 = arith.constant 0 : index
    %11 = vector.load %arg4[%c0_6, %c0_7] : memref<256x128xbf16, #tpu.memory_space<vmem>>, vector<256x128xbf16>
    %cst_8 = arith.constant dense<0.000000e+00> : vector<256x256xf32>
    %12 = tpu.matmul %11, %10, %cst_8 {dimension_numbers = #tpu.dot_dimension_numbers<[1], [0], [0], [1], [0, 0, 1, 1], [], []>} : vector<256x128xbf16>, vector<128x256xbf16>, vector<256x256xf32> -> vector<256x256xf32>
    %13 = arith.truncf %12 : vector<256x256xf32> to vector<256x256xbf16>
    %c0_9 = arith.constant 0 : index
    %c0_10 = arith.constant 0 : index
    %14 = vector.load %arg5[%c0_9, %c0_10] : memref<256x1xf32, #tpu.memory_space<vmem>>, vector<256x1xf32>
    %15 = arith.truncf %14 : vector<256x1xf32> to vector<256x1xbf16>
    %16 = vector.broadcast %15 : vector<256x1xbf16> to vector<256x256xbf16>
    %17 = arith.addf %13, %16 : vector<256x256xbf16>
    %cst_11 = arith.constant 0.000000e+00 : bf16
    %18 = vector.broadcast %cst_11 : bf16 to vector<256x256xbf16>
    %19 = arith.maximumf %17, %18 : vector<256x256xbf16>
    %c0_12 = arith.constant 0 : index
    %c0_13 = arith.constant 0 : index
    %20 = vector.load %arg6[%c0_12, %c0_13] : memref<8x256xbf16, #tpu.memory_space<vmem>>, vector<8x256xbf16>
    %cst_14 = arith.constant dense<0.000000e+00> : vector<8x256xf32>
    %21 = tpu.matmul %20, %19, %cst_14 {dimension_numbers = #tpu.dot_dimension_numbers<[1], [0], [0], [1], [0, 0, 1, 1], [], []>} : vector<8x256xbf16>, vector<256x256xbf16>, vector<8x256xf32> -> vector<8x256xf32>
    %c0_15 = arith.constant 0 : index
    %c0_16 = arith.constant 0 : index
    %22 = vector.load %arg7[%c0_15, %c0_16] : memref<8x1xf32, #tpu.memory_space<vmem>>, vector<8x1xf32>
    %23 = vector.broadcast %22 : vector<8x1xf32> to vector<8x256xf32>
    %24 = arith.addf %21, %23 : vector<8x256xf32>
    %c0_17 = arith.constant 0 : index
    %c0_18 = arith.constant 0 : index
    %25 = vector.load %arg8[%c0_17, %c0_18] : memref<8x256xf32, #tpu.memory_space<vmem>>, vector<8x256xf32>
    tpu.vector_store %arg8[%c0_17, %c0_18], %24 {strides = array<i32>} : memref<8x256xf32, #tpu.memory_space<vmem>>, vector<8x256xf32>,
    return
  }
  func.func @transform_0(%arg0: i32) -> (i32, i32) {
    %c0_i32 = arith.constant 0 : i32
    %c0_i32_0 = arith.constant 0 : i32
    return %c0_i32, %arg0 : i32, i32
  }
  func.func @transform_1(%arg0: i32) -> (i32, i32) {
    %c0_i32 = arith.constant 0 : i32
    %c0_i32_0 = arith.constant 0 : i32
    %c0_i32_1 = arith.constant 0 : i32
    return %c0_i32, %c0_i32_0 : i32, i32
  }
  func.func @transform_2(%arg0: i32) -> (i32, i32) {
    %c0_i32 = arith.constant 0 : i32
    %c0_i32_0 = arith.constant 0 : i32
    %c0_i32_1 = arith.constant 0 : i32
    return %c0_i32, %c0_i32_0 : i32, i32
  }
  func.func @transform_3(%arg0: i32) -> (i32, i32) {
    %c0_i32 = arith.constant 0 : i32
    %c0_i32_0 = arith.constant 0 : i32
    %c0_i32_1 = arith.constant 0 : i32
    return %c0_i32, %c0_i32_0 : i32, i32
  }
  func.func @transform_4(%arg0: i32) -> (i32, i32) {
    %c0_i32 = arith.constant 0 : i32
    %c0_i32_0 = arith.constant 0 : i32
    %c0_i32_1 = arith.constant 0 : i32
    return %c0_i32, %c0_i32_0 : i32, i32
  }
  func.func @transform_5(%arg0: i32) -> (i32, i32) {
    %c0_i32 = arith.constant 0 : i32
    %c0_i32_0 = arith.constant 0 : i32
    %c0_i32_1 = arith.constant 0 : i32
    return %c0_i32, %c0_i32_0 : i32, i32
  }
  func.func @transform_6(%arg0: i32) -> (i32, i32) {
    %c0_i32 = arith.constant 0 : i32
    %c0_i32_0 = arith.constant 0 : i32
    %c0_i32_1 = arith.constant 0 : i32
    return %c0_i32, %c0_i32_0 : i32, i32
  }
  func.func @transform_7(%arg0: i32) -> (i32, i32) {
    %c0_i32 = arith.constant 0 : i32
    %c0_i32_0 = arith.constant 0 : i32
    return %c0_i32, %arg0 : i32, i32
  }
}

</mosaic_0001>

<llo_original>
// kernel: tpu_custom_call.1
$region0: #{tpu_custom_call.1}
  #allocation0 [shape = 'u32[]', space=smem, size = 0x4, offset = 0x4, fixed_abs, tag = 'smem constant byte address 0x4 - core index']
  #allocation1 [shape = 'u32[144,128]{1,0:T(1,128)}', space=vmem, size = 0x12000, scoped, tag = 'internal scratch']
  %s0 = inlined_call_operand.vmem [shape: f32[4,512], index: 0, kind: input, shape index: {}]
  %s1 = inlined_call_operand.vmem [shape: bf16[128,4], index: 1, kind: input, shape index: {}]
  %s2 = inlined_call_operand.vmem [shape: f32[128,1], index: 2, kind: input, shape index: {}]
  %s3 = inlined_call_operand.vmem [shape: bf16[256,128], index: 3, kind: input, shape index: {}]
  %s4 = inlined_call_operand.vmem [shape: f32[256,1], index: 4, kind: input, shape index: {}]
  %s5 = inlined_call_operand.vmem [shape: bf16[8,256], index: 5, kind: input, shape index: {}]
  %s6 = inlined_call_operand.vmem [shape: f32[8,1], index: 6, kind: input, shape index: {}]
  %s7 = inlined_call_operand.hbm [shape: f32[8,512], index: 7, kind: output, shape index: {}]
  %s8 = sld [smem:[#allocation0]]
  $region61: #{tpu_custom_call.1} parent=0
    _
  %s10 = ssub.s32 1, %s8
  %s11 = scalar_select 0, %s10, %s8
  $region1: #{tpu_custom_call.1} parent=0
    #allocation2 [shape = 'u8[16384]{0}', space=vmem, size = 0x4000, scoped, tag = 'output window, operand 0']
    #allocation3 [shape = 's32[2]{0}', space=sflag, size = 0x8, scoped, tag = 'scoped memory for tpu_custom_call.1']
    %12 = vsyncpa [#allocation3], 0
    %s13 = scalar_lea.sflag [#allocation3], 1
    %14 = vsyncpa %s13, 0
    loop: start=0, step=1, limit=4
    $region2: #{tpu_custom_call.1} parent=1 // loop_pre_header
      _
    $region3: #{tpu_custom_call.1} parent=1 // loop_header
      %s16 = sphi 0, %s20
      %p17 = scmp.ge.s32.totalorder %s16, 4
      %s26 = sphi 0, %s28
      %s29 = sphi 0, %s26
      %s30 = sphi 0, %s29
      %s46 = sphi 0, %s30
      %s50 = sphi 0, %s50
      %s52 = sphi 0, %s50
      %s53 = sphi 0, %s52
      %s67 = sphi 0, %s53
      %s71 = sphi 0, %s71
      %s73 = sphi 0, %s71
      %s74 = sphi 0, %s73
      %s88 = sphi 0, %s74
      %s92 = sphi 0, %s92
      %s94 = sphi 0, %s92
      %s95 = sphi 0, %s94
      %s109 = sphi 0, %s95
      %s113 = sphi 0, %s113
      %s115 = sphi 0, %s113
      %s116 = sphi 0, %s115
      %s130 = sphi 0, %s116
      %s134 = sphi 0, %s134
      %s136 = sphi 0, %s134
      %s137 = sphi 0, %s136
      %s151 = sphi 0, %s137
      %s155 = sphi 0, %s155
      %s157 = sphi 0, %s155
      %s158 = sphi 0, %s157
      %s172 = sphi 0, %s158
      %s178 = sphi 0, %s180
      %s181 = sphi 0, %s178
      %s182 = sphi 0, %s181
      %s198 = sphi 0, %s182
    $region4: #{tpu_custom_call.1} parent=1 // loop_header_branch
      %19 = sbr.rel (%p17) target = $region8
    $region5: #{tpu_custom_call.1} parent=1 // loop_body
      %s21 = ssub.s32 %s16, 1
      %s22 = ssub.s32 %s16, 2
      %s23 = sadd.s32 %s16, 1
      %s24 = ssub.s32 %s16, %s23
      %p25 = scmp.eq.s32.totalorder %s24, 0
      %s27 = sadd.s32 %s26, 1
      %s28 = scalar_select %p25, %s26, %s27
      %p31 = pneg %p25
      %p32 = scmp.eq.s32.totalorder %s16, 1
      %p33 = por %p31, %p32
      %p34 = scmp.ne.s32.totalorder %s26, %s29
      %p35 = scmp.eq.s32.totalorder %s16, 0
      %p36 = por %p34, %p35
      %p37 = scmp.ne.s32.totalorder %s26, %s29
      %p38 = scmp.eq.s32.totalorder %s21, 1
      %p39 = por %p37, %p38
      %p40 = scmp.ne.s32.totalorder %s29, %s30
      %p41 = scmp.eq.s32.totalorder %s21, 0
      %p42 = por %p40, %p41
      %p43 = scmp.ne.s32.totalorder %s29, %s30
      %p44 = scmp.eq.s32.totalorder %s22, 1
      %p45 = por %p43, %p44
      %p47 = scmp.ne.s32.totalorder %s30, %s46
      %p48 = scmp.eq.s32.totalorder %s22, 0
      %p49 = por %p47, %p48
      %s51 = sadd.s32 %s50, 1
      %p54 = scmp.eq.s32.totalorder %s16, 1
      %p55 = scmp.ne.s32.totalorder %s50, %s52
      %p56 = scmp.eq.s32.totalorder %s16, 0
      %p57 = por %p55, %p56
      %p58 = scmp.ne.s32.totalorder %s50, %s52
      %p59 = scmp.eq.s32.totalorder %s21, 1
      %p60 = por %p58, %p59
      %p61 = scmp.ne.s32.totalorder %s52, %s53
      %p62 = scmp.eq.s32.totalorder %s21, 0
      %p63 = por %p61, %p62
      %p64 = scmp.ne.s32.totalorder %s52, %s53
      %p65 = scmp.eq.s32.totalorder %s22, 1
      %p66 = por %p64, %p65
      %p68 = scmp.ne.s32.totalorder %s53, %s67
      %p69 = scmp.eq.s32.totalorder %s22, 0
      %p70 = por %p68, %p69
      %s72 = sadd.s32 %s71, 1
      %p75 = scmp.eq.s32.totalorder %s16, 1
      %p76 = scmp.ne.s32.totalorder %s71, %s73
      %p77 = scmp.eq.s32.totalorder %s16, 0
      %p78 = por %p76, %p77
      %p79 = scmp.ne.s32.totalorder %s71, %s73
      %p80 = scmp.eq.s32.totalorder %s21, 1
      %p81 = por %p79, %p80
      %p82 = scmp.ne.s32.totalorder %s73, %s74
      %p83 = scmp.eq.s32.totalorder %s21, 0
      %p84 = por %p82, %p83
      %p85 = scmp.ne.s32.totalorder %s73, %s74
      %p86 = scmp.eq.s32.totalorder %s22, 1
      %p87 = por %p85, %p86
      %p89 = scmp.ne.s32.totalorder %s74, %s88
      %p90 = scmp.eq.s32.totalorder %s22, 0
      %p91 = por %p89, %p90
      %s93 = sadd.s32 %s92, 1
      %p96 = scmp.eq.s32.totalorder %s16, 1
      %p97 = scmp.ne.s32.totalorder %s92, %s94
      %p98 = scmp.eq.s32.totalorder %s16, 0
      %p99 = por %p97, %p98
      %p100 = scmp.ne.s32.totalorder %s92, %s94
      %p101 = scmp.eq.s32.totalorder %s21, 1
      %p102 = por %p100, %p101
      %p103 = scmp.ne.s32.totalorder %s94, %s95
      %p104 = scmp.eq.s32.totalorder %s21, 0
      %p105 = por %p103, %p104
      %p106 = scmp.ne.s32.totalorder %s94, %s95
      %p107 = scmp.eq.s32.totalorder %s22, 1
      %p108 = por %p106, %p107
      %p110 = scmp.ne.s32.totalorder %s95, %s109
      %p111 = scmp.eq.s32.totalorder %s22, 0
      %p112 = por %p110, %p111
      %s114 = sadd.s32 %s113, 1
      %p117 = scmp.eq.s32.totalorder %s16, 1
      %p118 = scmp.ne.s32.totalorder %s113, %s115
      %p119 = scmp.eq.s32.totalorder %s16, 0
      %p120 = por %p118, %p119
      %p121 = scmp.ne.s32.totalorder %s113, %s115
      %p122 = scmp.eq.s32.totalorder %s21, 1
      %p123 = por %p121, %p122
      %p124 = scmp.ne.s32.totalorder %s115, %s116
      %p125 = scmp.eq.s32.totalorder %s21, 0
      %p126 = por %p124, %p125
      %p127 = scmp.ne.s32.totalorder %s115, %s116
      %p128 = scmp.eq.s32.totalorder %s22, 1
      %p129 = por %p127, %p128
      %p131 = scmp.ne.s32.totalorder %s116, %s130
      %p132 = scmp.eq.s32.totalorder %s22, 0
      %p133 = por %p131, %p132
      %s135 = sadd.s32 %s134, 1
      %p138 = scmp.eq.s32.totalorder %s16, 1
      %p139 = scmp.ne.s32.totalorder %s134, %s136
      %p140 = scmp.eq.s32.totalorder %s16, 0
      %p141 = por %p139, %p140
      %p142 = scmp.ne.s32.totalorder %s134, %s136
      %p143 = scmp.eq.s32.totalorder %s21, 1
      %p144 = por %p142, %p143
      %p145 = scmp.ne.s32.totalorder %s136, %s137
      %p146 = scmp.eq.s32.totalorder %s21, 0
      %p147 = por %p145, %p146
      %p148 = scmp.ne.s32.totalorder %s136, %s137
      %p149 = scmp.eq.s32.totalorder %s22, 1
      %p150 = por %p148, %p149
      %p152 = scmp.ne.s32.totalorder %s137, %s151
      %p153 = scmp.eq.s32.totalorder %s22, 0
      %p154 = por %p152, %p153
      %s156 = sadd.s32 %s155, 1
      %p159 = scmp.eq.s32.totalorder %s16, 1
      %p160 = scmp.ne.s32.totalorder %s155, %s157
      %p161 = scmp.eq.s32.totalorder %s16, 0
      %p162 = por %p160, %p161
      %p163 = scmp.ne.s32.totalorder %s155, %s157
      %p164 = scmp.eq.s32.totalorder %s21, 1
      %p165 = por %p163, %p164
      %p166 = scmp.ne.s32.totalorder %s157, %s158
      %p167 = scmp.eq.s32.totalorder %s21, 0
      %p168 = por %p166, %p167
      %p169 = scmp.ne.s32.totalorder %s157, %s158
      %p170 = scmp.eq.s32.totalorder %s22, 1
      %p171 = por %p169, %p170
      %p173 = scmp.ne.s32.totalorder %s158, %s172
      %p174 = scmp.eq.s32.totalorder %s22, 0
      %p175 = por %p173, %p174
      %s176 = ssub.s32 %s16, %s23
      %p177 = scmp.eq.s32.totalorder %s176, 0
      %s179 = sadd.s32 %s178, 1
      %s180 = scalar_select %p177, %s178, %s179
      %p183 = pneg %p177
      %p184 = scmp.eq.s32.totalorder %s16, 1
      %p185 = por %p183, %p184
      %p186 = scmp.ne.s32.totalorder %s178, %s181
      %p187 = scmp.eq.s32.totalorder %s16, 0
      %p188 = por %p186, %p187
      %p189 = scmp.ne.s32.totalorder %s178, %s181
      %p190 = scmp.eq.s32.totalorder %s21, 1
      %p191 = por %p189, %p190
      %p192 = scmp.ne.s32.totalorder %s181, %s182
      %p193 = scmp.eq.s32.totalorder %s21, 0
      %p194 = por %p192, %p193
      %p195 = scmp.ne.s32.totalorder %s181, %s182
      %p196 = scmp.eq.s32.totalorder %s22, 1
      %p197 = por %p195, %p196
      %p199 = scmp.ne.s32.totalorder %s182, %s198
      %p200 = scmp.eq.s32.totalorder %s22, 0
      %p201 = por %p199, %p200
      %p202 = scmp.le.s32.totalorder 1, %s16
      %p203 = scmp.lt.s32.totalorder %s16, 3
      %p204 = pnand %p202, %p203
      %p205 = pneg %p204
      // Predicated region
      $region9: #{tpu_custom_call.1} parent=5 // pred_check
        _
      $region10: #{tpu_custom_call.1} parent=5 // pred_check_branch
        %207 = sbr.rel (%p204) target = $region12
      $region11: #{tpu_custom_call.1} parent=5 // pred_region
        %s208 = ssub.s32 %s16, 1
        // Predicated region
        $region13: #{tpu_custom_call.1} parent=11 // pred_check
          %p209 = pneg %p63
        $region14: #{tpu_custom_call.1} parent=11 // pred_check_branch
          %211 = sbr.rel (%p209) target = $region16
        $region15: #{tpu_custom_call.1} parent=11 // pred_region
          _
        $region16: #{tpu_custom_call.1} parent=11 // pred_fallthru
          _
        // Predicated region
        $region17: #{tpu_custom_call.1} parent=11 // pred_check
          %p212 = pneg %p84
        $region18: #{tpu_custom_call.1} parent=11 // pred_check_branch
          %214 = sbr.rel (%p212) target = $region20
        $region19: #{tpu_custom_call.1} parent=11 // pred_region
          _
        $region20: #{tpu_custom_call.1} parent=11 // pred_fallthru
          _
        // Predicated region
        $region21: #{tpu_custom_call.1} parent=11 // pred_check
          %p215 = pneg %p105
        $region22: #{tpu_custom_call.1} parent=11 // pred_check_branch
          %217 = sbr.rel (%p215) target = $region24
        $region23: #{tpu_custom_call.1} parent=11 // pred_region
          _
        $region24: #{tpu_custom_call.1} parent=11 // pred_fallthru
          _
        // Predicated region
        $region25: #{tpu_custom_call.1} parent=11 // pred_check
          %p218 = pneg %p126
        $region26: #{tpu_custom_call.1} parent=11 // pred_check_branch
          %220 = sbr.rel (%p218) target = $region28
        $region27: #{tpu_custom_call.1} parent=11 // pred_region
          _
        $region28: #{tpu_custom_call.1} parent=11 // pred_fallthru
          _
        // Predicated region
        $region29: #{tpu_custom_call.1} parent=11 // pred_check
          %p221 = pneg %p147
        $region30: #{tpu_custom_call.1} parent=11 // pred_check_branch
          %223 = sbr.rel (%p221) target = $region32
        $region31: #{tpu_custom_call.1} parent=11 // pred_region
          _
        $region32: #{tpu_custom_call.1} parent=11 // pred_fallthru
          _
        // Predicated region
        $region33: #{tpu_custom_call.1} parent=11 // pred_check
          %p224 = pneg %p168
        $region34: #{tpu_custom_call.1} parent=11 // pred_check_branch
          %226 = sbr.rel (%p224) target = $region36
        $region35: #{tpu_custom_call.1} parent=11 // pred_region
          _
        $region36: #{tpu_custom_call.1} parent=11 // pred_fallthru
          _
      $region12: #{tpu_custom_call.1} parent=5 // pred_fallthru
        _
      %p227 = scmp.lt.s32.totalorder %s16, 2
      // Predicated region
      $region37: #{tpu_custom_call.1} parent=5 // pred_check
        %p228 = pneg %p227
      $region38: #{tpu_custom_call.1} parent=5 // pred_check_branch
        %230 = sbr.rel (%p228) target = $region40
      $region39: #{tpu_custom_call.1} parent=5 // pred_region
        // Predicated region
        $region41: #{tpu_custom_call.1} parent=39 // pred_check
          %p231 = pneg %p36
        $region42: #{tpu_custom_call.1} parent=39 // pred_check_branch
          %233 = sbr.rel (%p231) target = $region44
        $region43: #{tpu_custom_call.1} parent=39 // pred_region
          %s234 = smul.u32 2, %s16
          %p235 = scmp.lt.s32.totalorder %s234, 3
          %s236 = scalar_select %p235, %s234, 3
          %s237 = smul.addr %s236, 4
          %s238 = scalar_lea.vmem %s0, %s237
          %s239 = smul.u32 2, %s16
        $region44: #{tpu_custom_call.1} parent=39 // pred_fallthru
          _
      $region40: #{tpu_custom_call.1} parent=5 // pred_fallthru
        _
      %p240 = scmp.le.s32.totalorder 1, %s16
      %p241 = scmp.lt.s32.totalorder %s16, 3
      %p242 = pnand %p240, %p241
      %p243 = pneg %p242
      // Predicated region
      $region45: #{tpu_custom_call.1} parent=5 // pred_check
        _
      $region46: #{tpu_custom_call.1} parent=5 // pred_check_branch
        %245 = sbr.rel (%p242) target = $region48
      $region47: #{tpu_custom_call.1} parent=5 // pred_region
        %s246 = ssub.s32 %s16, 1
        %s247 = smul.u32 2, %s21
        %p248 = scmp.lt.s32.totalorder %s247, 3
        %s249 = scalar_select %p248, %s247, 3
        %s250 = smul.addr %s249, 4
        %s251 = scalar_lea.vmem %s0, %s250
        %p252 = pneg %p42
        %p253 = pneg %p39
        %p254 = pneg %p63
        %p255 = pneg %p60
        %p256 = pneg %p84
        %p257 = pneg %p81
        %p258 = pneg %p105
        %p259 = pneg %p102
        %p260 = pneg %p126
        %p261 = pneg %p123
        %p262 = pneg %p147
        %p263 = pneg %p144
        %p264 = pneg %p168
        %p265 = pneg %p165
        %p266 = pneg %p194
        %p267 = pneg %p191
        %s268 = sand.u32 %s181, 1
        %s269 = scalar_lea.sflag [#allocation3], %s268
        %s270 = sand.u32 %s181, 1
        %s271 = smul.addr %s270, 16
        %s272 = scalar_lea.vmem [#allocation2], %s271
        %s273 = smul.u32 2, %s21
        %p274 = scmp.lt.s32.totalorder %s273, 3
        %s275 = scalar_select %p274, %s273, 3
        %s276 = smul.addr %s275, 4
        %s277 = scalar_lea.vmem %s0, %s276
        %s278 = smul.u32 2, %s21
        %s279 = smul.u32 2, %s21
        %v281 = vld [vmem:[%s277] sm:$0xff]
        %v282 = vld [vmem:[%s1] sm:$0xf]
        %v283 = vld [vmem:[%s1 + $0x4] sm:$0xf]
        %v284 = vld [vmem:[%s1 + $0x8] sm:$0xf]
        %v285 = vld [vmem:[%s1 + $0xc] sm:$0xf]
        %v286 = vld [vmem:[%s1 + $0x10] sm:$0xf]
        %v287 = vld [vmem:[%s1 + $0x14] sm:$0xf]
        %v288 = vld [vmem:[%s1 + $0x18] sm:$0xf]
        %v289 = vld [vmem:[%s1 + $0x1c] sm:$0xf]
        %v290 = vld [vmem:[%s1 + $0x20] sm:$0xf]
        %v291 = vld [vmem:[%s1 + $0x24] sm:$0xf]
        %v292 = vld [vmem:[%s1 + $0x28] sm:$0xf]
        %v293 = vld [vmem:[%s1 + $0x2c] sm:$0xf]
        %v294 = vld [vmem:[%s1 + $0x30] sm:$0xf]
        %v295 = vld [vmem:[%s1 + $0x34] sm:$0xf]
        %v296 = vld [vmem:[%s1 + $0x38] sm:$0xf]
        %v297 = vld [vmem:[%s1 + $0x3c] sm:$0xf]
        %v299 = vcombine.high %v281, %v281
        %v301 = vpack.c.bf16 %v281, %v281
        %v302 = vpack.c.bf16 %v299, %v299
        %v319 = vunpack.c.l.b16 %v282
        %v320 = vunpack.c.l.b16 %v283
        %v321 = vunpack.c.l.b16 %v284
        %v322 = vunpack.c.l.b16 %v285
        %v323 = vunpack.c.l.b16 %v286
        %v324 = vunpack.c.l.b16 %v287
        %v325 = vunpack.c.l.b16 %v288
        %v326 = vunpack.c.l.b16 %v289
        %v327 = vunpack.c.l.b16 %v290
        %v328 = vunpack.c.l.b16 %v291
        %v329 = vunpack.c.l.b16 %v292
        %v330 = vunpack.c.l.b16 %v293
        %v331 = vunpack.c.l.b16 %v294
        %v332 = vunpack.c.l.b16 %v295
        %v333 = vunpack.c.l.b16 %v296
        %v334 = vunpack.c.l.b16 %v297
        %v335 = vpack.c.b16 %v320, %v319
        %v336 = vpack.c.b16 %v322, %v321
        %v337 = vpack.c.b16 %v324, %v323
        %v338 = vpack.c.b16 %v326, %v325
        %v339 = vpack.c.b16 %v328, %v327
        %v340 = vpack.c.b16 %v330, %v329
        %v341 = vpack.c.b16 %v332, %v331
        %v342 = vpack.c.b16 %v334, %v333
        %vm343 = vcmask 31744
        %v345 = vsel %vm343, %v335, 0
        %v348 = vsel %vm343, %v336, 0
        %v351 = vsel %vm343, %v337, 0
        %v354 = vsel %vm343, %v338, 0
        %v357 = vsel %vm343, %v339, 0
        %v360 = vsel %vm343, %v340, 0
        %v363 = vsel %vm343, %v341, 0
        %v366 = vsel %vm343, %v342, 0
        %vm368 = vcmask 1041408
        %v370 = vsel %vm368, %v301, 0
        %v373 = vsel %vm368, %v302, 0
        %375 = vmatprep.subr.bf16.mxu0 %v373
        %376 = vmatpush1.bf16.msra.mxu0 %v370
        %377 = vmatprep.subr.bf16.mxu0 0
        %378 = vmatpush1.bf16.msra.mxu0 0
        %379 = vmatprep.subr.bf16.mxu0 0
        %380 = vmatpush1.bf16.msra.mxu0 0
        %381 = vmatprep.subr.bf16.mxu0 0
        %382 = vmatpush1.bf16.msra.mxu0 0
        %383 = vmatprep.subr.bf16.mxu0 0
        %384 = vmatpush1.bf16.msra.mxu0 0
        %385 = vmatprep.subr.bf16.mxu0 0
        %386 = vmatpush1.bf16.msra.mxu0 0
        %387 = vmatprep.subr.bf16.mxu0 0
        %388 = vmatpush1.bf16.msra.mxu0 0
        %389 = vmatprep.subr.bf16.mxu0 0
        %390 = vmatpush1.bf16.msra.mxu0 0
        %391 = vmatprep.subr.bf16.mxu0 0
        %392 = vmatpush1.bf16.msra.mxu0 0
        %393 = vmatprep.subr.bf16.mxu0 0
        %394 = vmatpush1.bf16.msra.mxu0 0
        %395 = vmatprep.subr.bf16.mxu0 0
        %396 = vmatpush1.bf16.msra.mxu0 0
        %397 = vmatprep.subr.bf16.mxu0 0
        %398 = vmatpush1.bf16.msra.mxu0 0
        %399 = vmatprep.subr.bf16.mxu0 0
        %400 = vmatpush1.bf16.msra.mxu0 0
        %401 = vmatprep.subr.bf16.mxu0 0
        %402 = vmatpush1.bf16.msra.mxu0 0
        %403 = vmatprep.subr.bf16.mxu0 0
        %404 = vmatpush1.bf16.msra.mxu0 0
        %405 = vmatprep.subr.bf16.mxu0 0
        %406 = vmatpush1.bf16.msra.mxu0 0
        %407 = vmatprep.mubr.bf16.mxu0 0
        %408 = vmatmul.mubr.bf16.gmra.mrb[0].mxu0 %v345
        %v409 = vpop.f32.mrb[0].mxu0
        %v410 = vadd.f32 0.0, %v409
        %v411 = vpop.f32.mrb[0].mxu0
        %v412 = vadd.f32 0.0, %v411
        %v413 = vpop.f32.mrb[0].mxu0
        %v414 = vadd.f32 0.0, %v413
        %v415 = vpop.f32.mrb[0].mxu0
        %v416 = vadd.f32 0.0, %v415
        %417 = vmatprep.mubr.bf16.mxu0 0
        %418 = vmatmul.mubr.bf16.gmra.mrb[0].mxu0 %v348
        %v419 = vpop.f32.mrb[0].mxu0
        %v420 = vadd.f32 0.0, %v419
        %v421 = vpop.f32.mrb[0].mxu0
        %v422 = vadd.f32 0.0, %v421
        %v423 = vpop.f32.mrb[0].mxu0
        %v424 = vadd.f32 0.0, %v423
        %v425 = vpop.f32.mrb[0].mxu0
        %v426 = vadd.f32 0.0, %v425
        %427 = vmatprep.mubr.bf16.mxu0 0
        %428 = vmatmul.mubr.bf16.gmra.mrb[0].mxu0 %v351
        %v429 = vpop.f32.mrb[0].mxu0
        %v430 = vadd.f32 0.0, %v429
        %v431 = vpop.f32.mrb[0].mxu0
        %v432 = vadd.f32 0.0, %v431
        %v433 = vpop.f32.mrb[0].mxu0
        %v434 = vadd.f32 0.0, %v433
        %v435 = vpop.f32.mrb[0].mxu0
        %v436 = vadd.f32 0.0, %v435
        %437 = vmatprep.mubr.bf16.mxu0 0
        %438 = vmatmul.mubr.bf16.gmra.mrb[0].mxu0 %v354
        %v439 = vpop.f32.mrb[0].mxu0
        %v440 = vadd.f32 0.0, %v439
        %v441 = vpop.f32.mrb[0].mxu0
        %v442 = vadd.f32 0.0, %v441
        %v443 = vpop.f32.mrb[0].mxu0
        %v444 = vadd.f32 0.0, %v443
        %v445 = vpop.f32.mrb[0].mxu0
        %v446 = vadd.f32 0.0, %v445
        %447 = vmatprep.mubr.bf16.mxu0 0
        %448 = vmatmul.mubr.bf16.gmra.mrb[0].mxu0 %v357
        %v449 = vpop.f32.mrb[0].mxu0
        %v450 = vadd.f32 0.0, %v449
        %v451 = vpop.f32.mrb[0].mxu0
        %v452 = vadd.f32 0.0, %v451
        %v453 = vpop.f32.mrb[0].mxu0
        %v454 = vadd.f32 0.0, %v453
        %v455 = vpop.f32.mrb[0].mxu0
        %v456 = vadd.f32 0.0, %v455
        %457 = vmatprep.mubr.bf16.mxu0 0
        %458 = vmatmul.mubr.bf16.gmra.mrb[0].mxu0 %v360
        %v459 = vpop.f32.mrb[0].mxu0
        %v460 = vadd.f32 0.0, %v459
        %v461 = vpop.f32.mrb[0].mxu0
        %v462 = vadd.f32 0.0, %v461
        %v463 = vpop.f32.mrb[0].mxu0
        %v464 = vadd.f32 0.0, %v463
        %v465 = vpop.f32.mrb[0].mxu0
        %v466 = vadd.f32 0.0, %v465
        %467 = vmatprep.mubr.bf16.mxu0 0
        %468 = vmatmul.mubr.bf16.gmra.mrb[0].mxu0 %v363
        %v469 = vpop.f32.mrb[0].mxu0
        %v470 = vadd.f32 0.0, %v469
        %v471 = vpop.f32.mrb[0].mxu0
        %v472 = vadd.f32 0.0, %v471
        %v473 = vpop.f32.mrb[0].mxu0
        %v474 = vadd.f32 0.0, %v473
        %v475 = vpop.f32.mrb[0].mxu0
        %v476 = vadd.f32 0.0, %v475
        %477 = vmatprep.mubr.bf16.mxu0 0
        %478 = vmatmul.mubr.bf16.gmra.mrb[0].mxu0 %v366
        %v479 = vpop.f32.mrb[0].mxu0
        %v480 = vadd.f32 0.0, %v479
        %v481 = vpop.f32.mrb[0].mxu0
        %v482 = vadd.f32 0.0, %v481
        %v483 = vpop.f32.mrb[0].mxu0
        %v484 = vadd.f32 0.0, %v483
        %v485 = vpop.f32.mrb[0].mxu0
        %v486 = vadd.f32 0.0, %v485
        %487 = vdwg.mxu0
        %v488 = vpack.c.bf16 %v414, %v410
        %v489 = vpack.c.bf16 %v416, %v412
        %v490 = vpack.c.bf16 %v424, %v420
        %v491 = vpack.c.bf16 %v426, %v422
        %v492 = vpack.c.bf16 %v434, %v430
        %v493 = vpack.c.bf16 %v436, %v432
        %v494 = vpack.c.bf16 %v444, %v440
        %v495 = vpack.c.bf16 %v446, %v442
        %v496 = vpack.c.bf16 %v454, %v450
        %v497 = vpack.c.bf16 %v456, %v452
        %v498 = vpack.c.bf16 %v464, %v460
        %v499 = vpack.c.bf16 %v466, %v462
        %v500 = vpack.c.bf16 %v474, %v470
        %v501 = vpack.c.bf16 %v476, %v472
        %v502 = vpack.c.bf16 %v484, %v480
        %v503 = vpack.c.bf16 %v486, %v482
        %v504 = vld [vmem:[%s2] sm:$0xff]
        %v505 = vld [vmem:[%s2 + $0x8] sm:$0xff]
        %v506 = vld [vmem:[%s2 + $0x10] sm:$0xff]
        %v507 = vld [vmem:[%s2 + $0x18] sm:$0xff]
        %v508 = vld [vmem:[%s2 + $0x20] sm:$0xff]
        %v509 = vld [vmem:[%s2 + $0x28] sm:$0xff]
        %v510 = vld [vmem:[%s2 + $0x30] sm:$0xff]
        %v511 = vld [vmem:[%s2 + $0x38] sm:$0xff]
        %v512 = vld [vmem:[%s2 + $0x40] sm:$0xff]
        %v513 = vld [vmem:[%s2 + $0x48] sm:$0xff]
        %v514 = vld [vmem:[%s2 + $0x50] sm:$0xff]
        %v515 = vld [vmem:[%s2 + $0x58] sm:$0xff]
        %v516 = vld [vmem:[%s2 + $0x60] sm:$0xff]
        %v517 = vld [vmem:[%s2 + $0x68] sm:$0xff]
        %v518 = vld [vmem:[%s2 + $0x70] sm:$0xff]
        %v519 = vld [vmem:[%s2 + $0x78] sm:$0xff]
        %v520 = vpack.c.bf16 %v505, %v504
        %v521 = vpack.c.bf16 %v507, %v506
        %v522 = vpack.c.bf16 %v509, %v508
        %v523 = vpack.c.bf16 %v511, %v510
        %v524 = vpack.c.bf16 %v513, %v512
        %v525 = vpack.c.bf16 %v515, %v514
        %v526 = vpack.c.bf16 %v517, %v516
        %v527 = vpack.c.bf16 %v519, %v518
        %529 = vset.pattern.permute.xlu0 0
        %530 = vperm.xlu0 %529, %v520
        %v531 = vpop.permute.xlu0 %530
        %534 = vset.pattern.permute.xlu0 0
        %535 = vperm.xlu0 %534, %v521
        %v536 = vpop.permute.xlu0 %535
        %539 = vset.pattern.permute.xlu0 0
        %540 = vperm.xlu0 %539, %v522
        %v541 = vpop.permute.xlu0 %540
        %544 = vset.pattern.permute.xlu0 0
        %545 = vperm.xlu0 %544, %v523
        %v546 = vpop.permute.xlu0 %545
        %549 = vset.pattern.permute.xlu0 0
        %550 = vperm.xlu0 %549, %v524
        %v551 = vpop.permute.xlu0 %550
        %554 = vset.pattern.permute.xlu0 0
        %555 = vperm.xlu0 %554, %v525
        %v556 = vpop.permute.xlu0 %555
        %559 = vset.pattern.permute.xlu0 0
        %560 = vperm.xlu0 %559, %v526
        %v561 = vpop.permute.xlu0 %560
        %564 = vset.pattern.permute.xlu0 0
        %565 = vperm.xlu0 %564, %v527
        %v566 = vpop.permute.xlu0 %565
        %v568 = vadd.bf16 %v488, %v531
        %v569 = vadd.bf16 %v489, %v531
        %v570 = vadd.bf16 %v490, %v536
        %v571 = vadd.bf16 %v491, %v536
        %v572 = vadd.bf16 %v492, %v541
        %v573 = vadd.bf16 %v493, %v541
        %v574 = vadd.bf16 %v494, %v546
        %v575 = vadd.bf16 %v495, %v546
        %v576 = vadd.bf16 %v496, %v551
        %v577 = vadd.bf16 %v497, %v551
        %v578 = vadd.bf16 %v498, %v556
        %v579 = vadd.bf16 %v499, %v556
        %v580 = vadd.bf16 %v500, %v561
        %v581 = vadd.bf16 %v501, %v561
        %v582 = vadd.bf16 %v502, %v566
        %v583 = vadd.bf16 %v503, %v566
        %v584 = vmax.bf16 %v568, 0
        %v585 = vmax.bf16 %v569, 0
        %v586 = vmax.bf16 %v570, 0
        %v587 = vmax.bf16 %v571, 0
        %v588 = vmax.bf16 %v572, 0
        %v589 = vmax.bf16 %v573, 0
        %v590 = vmax.bf16 %v574, 0
        %v591 = vmax.bf16 %v575, 0
        %v592 = vmax.bf16 %v576, 0
        %v593 = vmax.bf16 %v577, 0
        %v594 = vmax.bf16 %v578, 0
        %v595 = vmax.bf16 %v579, 0
        %v596 = vmax.bf16 %v580, 0
        %v597 = vmax.bf16 %v581, 0
        %v598 = vmax.bf16 %v582, 0
        %v599 = vmax.bf16 %v583, 0
        %v600 = vld [vmem:[%s3] sm:$0xf]
        %v601 = vld [vmem:[%s3 + $0x4] sm:$0xf]
        %v602 = vld [vmem:[%s3 + $0x8] sm:$0xf]
        %v603 = vld [vmem:[%s3 + $0xc] sm:$0xf]
        %v604 = vld [vmem:[%s3 + $0x10] sm:$0xf]
        %v605 = vld [vmem:[%s3 + $0x14] sm:$0xf]
        %v606 = vld [vmem:[%s3 + $0x18] sm:$0xf]
        %v607 = vld [vmem:[%s3 + $0x1c] sm:$0xf]
        %v608 = vld [vmem:[%s3 + $0x20] sm:$0xf]
        %v609 = vld [vmem:[%s3 + $0x24] sm:$0xf]
        %v610 = vld [vmem:[%s3 + $0x28] sm:$0xf]
        %v611 = vld [vmem:[%s3 + $0x2c] sm:$0xf]
        %v612 = vld [vmem:[%s3 + $0x30] sm:$0xf]
        %v613 = vld [vmem:[%s3 + $0x34] sm:$0xf]
        %v614 = vld [vmem:[%s3 + $0x38] sm:$0xf]
        %v615 = vld [vmem:[%s3 + $0x3c] sm:$0xf]
        %v616 = vld [vmem:[%s3 + $0x40] sm:$0xf]
        %v617 = vld [vmem:[%s3 + $0x44] sm:$0xf]
        %v618 = vld [vmem:[%s3 + $0x48] sm:$0xf]
        %v619 = vld [vmem:[%s3 + $0x4c] sm:$0xf]
        %v620 = vld [vmem:[%s3 + $0x50] sm:$0xf]
        %v621 = vld [vmem:[%s3 + $0x54] sm:$0xf]
        %v622 = vld [vmem:[%s3 + $0x58] sm:$0xf]
        %v623 = vld [vmem:[%s3 + $0x5c] sm:$0xf]
        %v624 = vld [vmem:[%s3 + $0x60] sm:$0xf]
        %v625 = vld [vmem:[%s3 + $0x64] sm:$0xf]
        %v626 = vld [vmem:[%s3 + $0x68] sm:$0xf]
        %v627 = vld [vmem:[%s3 + $0x6c] sm:$0xf]
        %v628 = vld [vmem:[%s3 + $0x70] sm:$0xf]
        %v629 = vld [vmem:[%s3 + $0x74] sm:$0xf]
        %v630 = vld [vmem:[%s3 + $0x78] sm:$0xf]
        %v631 = vld [vmem:[%s3 + $0x7c] sm:$0xf]
        %v664 = vunpack.c.l.b16 %v600
        %v665 = vunpack.c.l.b16 %v601
        %v666 = vunpack.c.l.b16 %v602
        %v667 = vunpack.c.l.b16 %v603
        %v668 = vunpack.c.l.b16 %v604
        %v669 = vunpack.c.l.b16 %v605
        %v670 = vunpack.c.l.b16 %v606
        %v671 = vunpack.c.l.b16 %v607
        %v672 = vunpack.c.l.b16 %v608
        %v673 = vunpack.c.l.b16 %v609
        %v674 = vunpack.c.l.b16 %v610
        %v675 = vunpack.c.l.b16 %v611
        %v676 = vunpack.c.l.b16 %v612
        %v677 = vunpack.c.l.b16 %v613
        %v678 = vunpack.c.l.b16 %v614
        %v679 = vunpack.c.l.b16 %v615
        %v680 = vunpack.c.l.b16 %v616
        %v681 = vunpack.c.l.b16 %v617
        %v682 = vunpack.c.l.b16 %v618
        %v683 = vunpack.c.l.b16 %v619
        %v684 = vunpack.c.l.b16 %v620
        %v685 = vunpack.c.l.b16 %v621
        %v686 = vunpack.c.l.b16 %v622
        %v687 = vunpack.c.l.b16 %v623
        %v688 = vunpack.c.l.b16 %v624
        %v689 = vunpack.c.l.b16 %v625
        %v690 = vunpack.c.l.b16 %v626
        %v691 = vunpack.c.l.b16 %v627
        %v692 = vunpack.c.l.b16 %v628
        %v693 = vunpack.c.l.b16 %v629
        %v694 = vunpack.c.l.b16 %v630
        %v695 = vunpack.c.l.b16 %v631
        %v696 = vpack.c.b16 %v665, %v664
        %v697 = vpack.c.b16 %v667, %v666
        %v698 = vpack.c.b16 %v669, %v668
        %v699 = vpack.c.b16 %v671, %v670
        %v700 = vpack.c.b16 %v673, %v672
        %v701 = vpack.c.b16 %v675, %v674
        %v702 = vpack.c.b16 %v677, %v676
        %v703 = vpack.c.b16 %v679, %v678
        %v704 = vpack.c.b16 %v681, %v680
        %v705 = vpack.c.b16 %v683, %v682
        %v706 = vpack.c.b16 %v685, %v684
        %v707 = vpack.c.b16 %v687, %v686
        %v708 = vpack.c.b16 %v689, %v688
        %v709 = vpack.c.b16 %v691, %v690
        %v710 = vpack.c.b16 %v693, %v692
        %v711 = vpack.c.b16 %v695, %v694
        %728 = vmatprep.subr.bf16.mxu0 %v585
        %729 = vmatpush1.bf16.msra.mxu0 %v584
        %730 = vmatprep.subr.bf16.mxu0 %v587
        %731 = vmatpush1.bf16.msra.mxu0 %v586
        %732 = vmatprep.subr.bf16.mxu0 %v589
        %733 = vmatpush1.bf16.msra.mxu0 %v588
        %734 = vmatprep.subr.bf16.mxu0 %v591
        %735 = vmatpush1.bf16.msra.mxu0 %v590
        %736 = vmatprep.subr.bf16.mxu0 %v593
        %737 = vmatpush1.bf16.msra.mxu0 %v592
        %738 = vmatprep.subr.bf16.mxu0 %v595
        %739 = vmatpush1.bf16.msra.mxu0 %v594
        %740 = vmatprep.subr.bf16.mxu0 %v597
        %741 = vmatpush1.bf16.msra.mxu0 %v596
        %742 = vmatprep.subr.bf16.mxu0 %v599
        %743 = vmatpush1.bf16.msra.mxu0 %v598
        %744 = vmatprep.subr.bf16.mxu0 0
        %745 = vmatpush1.bf16.msra.mxu0 0
        %746 = vmatprep.subr.bf16.mxu0 0
        %747 = vmatpush1.bf16.msra.mxu0 0
        %748 = vmatprep.subr.bf16.mxu0 0
        %749 = vmatpush1.bf16.msra.mxu0 0
        %750 = vmatprep.subr.bf16.mxu0 0
        %751 = vmatpush1.bf16.msra.mxu0 0
        %752 = vmatprep.subr.bf16.mxu0 0
        %753 = vmatpush1.bf16.msra.mxu0 0
        %754 = vmatprep.subr.bf16.mxu0 0
        %755 = vmatpush1.bf16.msra.mxu0 0
        %756 = vmatprep.subr.bf16.mxu0 0
        %757 = vmatpush1.bf16.msra.mxu0 0
        %758 = vmatprep.subr.bf16.mxu0 0
        %759 = vmatpush1.bf16.msra.mxu0 0
        %760 = vmatprep.mubr.bf16.mxu0 0
        %761 = vmatmul.mubr.bf16.gmra.mrb[0].mxu0 %v696
        %v762 = vpop.f32.mrb[0].mxu0
        %v763 = vadd.f32 0.0, %v762
        %v764 = vpop.f32.mrb[0].mxu0
        %v765 = vadd.f32 0.0, %v764
        %v766 = vpop.f32.mrb[0].mxu0
        %v767 = vadd.f32 0.0, %v766
        %v768 = vpop.f32.mrb[0].mxu0
        %v769 = vadd.f32 0.0, %v768
        %770 = vmatprep.mubr.bf16.mxu0 0
        %771 = vmatmul.mubr.bf16.gmra.mrb[0].mxu0 %v697
        %v772 = vpop.f32.mrb[0].mxu0
        %v773 = vadd.f32 0.0, %v772
        %v774 = vpop.f32.mrb[0].mxu0
        %v775 = vadd.f32 0.0, %v774
        %v776 = vpop.f32.mrb[0].mxu0
        %v777 = vadd.f32 0.0, %v776
        %v778 = vpop.f32.mrb[0].mxu0
        %v779 = vadd.f32 0.0, %v778
        %780 = vmatprep.mubr.bf16.mxu0 0
        %781 = vmatmul.mubr.bf16.gmra.mrb[0].mxu0 %v698
        %v782 = vpop.f32.mrb[0].mxu0
        %v783 = vadd.f32 0.0, %v782
        %v784 = vpop.f32.mrb[0].mxu0
        %v785 = vadd.f32 0.0, %v784
        %v786 = vpop.f32.mrb[0].mxu0
        %v787 = vadd.f32 0.0, %v786
        %v788 = vpop.f32.mrb[0].mxu0
        %v789 = vadd.f32 0.0, %v788
        %790 = vmatprep.mubr.bf16.mxu0 0
        %791 = vmatmul.mubr.bf16.gmra.mrb[0].mxu0 %v699
        %v792 = vpop.f32.mrb[0].mxu0
        %v793 = vadd.f32 0.0, %v792
        %v794 = vpop.f32.mrb[0].mxu0
        %v795 = vadd.f32 0.0, %v794
        %v796 = vpop.f32.mrb[0].mxu0
        %v797 = vadd.f32 0.0, %v796
        %v798 = vpop.f32.mrb[0].mxu0
        %v799 = vadd.f32 0.0, %v798
        %800 = vmatprep.mubr.bf16.mxu0 0
        %801 = vmatmul.mubr.bf16.gmra.mrb[0].mxu0 %v700
        %v802 = vpop.f32.mrb[0].mxu0
        %v803 = vadd.f32 0.0, %v802
        %v804 = vpop.f32.mrb[0].mxu0
        %v805 = vadd.f32 0.0, %v804
        %v806 = vpop.f32.mrb[0].mxu0
        %v807 = vadd.f32 0.0, %v806
        %v808 = vpop.f32.mrb[0].mxu0
        %v809 = vadd.f32 0.0, %v808
        %810 = vmatprep.mubr.bf16.mxu0 0
        %811 = vmatmul.mubr.bf16.gmra.mrb[0].mxu0 %v701
        %v812 = vpop.f32.mrb[0].mxu0
        %v813 = vadd.f32 0.0, %v812
        %v814 = vpop.f32.mrb[0].mxu0
        %v815 = vadd.f32 0.0, %v814
        %v816 = vpop.f32.mrb[0].mxu0
        %v817 = vadd.f32 0.0, %v816
        %v818 = vpop.f32.mrb[0].mxu0
        %v819 = vadd.f32 0.0, %v818
        %820 = vmatprep.mubr.bf16.mxu0 0
        %821 = vmatmul.mubr.bf16.gmra.mrb[0].mxu0 %v702
        %v822 = vpop.f32.mrb[0].mxu0
        %v823 = vadd.f32 0.0, %v822
        %v824 = vpop.f32.mrb[0].mxu0
        %v825 = vadd.f32 0.0, %v824
        %v826 = vpop.f32.mrb[0].mxu0
        %v827 = vadd.f32 0.0, %v826
        %v828 = vpop.f32.mrb[0].mxu0
        %v829 = vadd.f32 0.0, %v828
        %830 = vmatprep.mubr.bf16.mxu0 0
        %831 = vmatmul.mubr.bf16.gmra.mrb[0].mxu0 %v703
        %v832 = vpop.f32.mrb[0].mxu0
        %v833 = vadd.f32 0.0, %v832
        %v834 = vpop.f32.mrb[0].mxu0
        %v835 = vadd.f32 0.0, %v834
        %v836 = vpop.f32.mrb[0].mxu0
        %v837 = vadd.f32 0.0, %v836
        %v838 = vpop.f32.mrb[0].mxu0
        %v839 = vadd.f32 0.0, %v838
        %840 = vmatprep.mubr.bf16.mxu0 0
        %841 = vmatmul.mubr.bf16.gmra.mrb[0].mxu0 %v704
        %v842 = vpop.f32.mrb[0].mxu0
        %v843 = vadd.f32 0.0, %v842
        %v844 = vpop.f32.mrb[0].mxu0
        %v845 = vadd.f32 0.0, %v844
        %v846 = vpop.f32.mrb[0].mxu0
        %v847 = vadd.f32 0.0, %v846
        %v848 = vpop.f32.mrb[0].mxu0
        %v849 = vadd.f32 0.0, %v848
        %850 = vmatprep.mubr.bf16.mxu0 0
        %851 = vmatmul.mubr.bf16.gmra.mrb[0].mxu0 %v705
        %v852 = vpop.f32.mrb[0].mxu0
        %v853 = vadd.f32 0.0, %v852
        %v854 = vpop.f32.mrb[0].mxu0
        %v855 = vadd.f32 0.0, %v854
        %v856 = vpop.f32.mrb[0].mxu0
        %v857 = vadd.f32 0.0, %v856
        %v858 = vpop.f32.mrb[0].mxu0
        %v859 = vadd.f32 0.0, %v858
        %860 = vmatprep.mubr.bf16.mxu0 0
        %861 = vmatmul.mubr.bf16.gmra.mrb[0].mxu0 %v706
        %v862 = vpop.f32.mrb[0].mxu0
        %v863 = vadd.f32 0.0, %v862
        %v864 = vpop.f32.mrb[0].mxu0
        %v865 = vadd.f32 0.0, %v864
        %v866 = vpop.f32.mrb[0].mxu0
        %v867 = vadd.f32 0.0, %v866
        %v868 = vpop.f32.mrb[0].mxu0
        %v869 = vadd.f32 0.0, %v868
        %870 = vmatprep.mubr.bf16.mxu0 0
        %871 = vmatmul.mubr.bf16.gmra.mrb[0].mxu0 %v707
        %v872 = vpop.f32.mrb[0].mxu0
        %v873 = vadd.f32 0.0, %v872
        %v874 = vpop.f32.mrb[0].mxu0
        %v875 = vadd.f32 0.0, %v874
        %v876 = vpop.f32.mrb[0].mxu0
        %v877 = vadd.f32 0.0, %v876
        %v878 = vpop.f32.mrb[0].mxu0
        %v879 = vadd.f32 0.0, %v878
        %880 = vmatprep.mubr.bf16.mxu0 0
        %881 = vmatmul.mubr.bf16.gmra.mrb[0].mxu0 %v708
        %v882 = vpop.f32.mrb[0].mxu0
        %v883 = vadd.f32 0.0, %v882
        %v884 = vpop.f32.mrb[0].mxu0
        %v885 = vadd.f32 0.0, %v884
        %v886 = vpop.f32.mrb[0].mxu0
        %v887 = vadd.f32 0.0, %v886
        %v888 = vpop.f32.mrb[0].mxu0
        %v889 = vadd.f32 0.0, %v888
        %890 = vmatprep.mubr.bf16.mxu0 0
        %891 = vmatmul.mubr.bf16.gmra.mrb[0].mxu0 %v709
        %v892 = vpop.f32.mrb[0].mxu0
        %v893 = vadd.f32 0.0, %v892
        %v894 = vpop.f32.mrb[0].mxu0
        %v895 = vadd.f32 0.0, %v894
        %v896 = vpop.f32.mrb[0].mxu0
        %v897 = vadd.f32 0.0, %v896
        %v898 = vpop.f32.mrb[0].mxu0
        %v899 = vadd.f32 0.0, %v898
        %900 = vmatprep.mubr.bf16.mxu0 0
        %901 = vmatmul.mubr.bf16.gmra.mrb[0].mxu0 %v710
        %v902 = vpop.f32.mrb[0].mxu0
        %v903 = vadd.f32 0.0, %v902
        %v904 = vpop.f32.mrb[0].mxu0
        %v905 = vadd.f32 0.0, %v904
        %v906 = vpop.f32.mrb[0].mxu0
        %v907 = vadd.f32 0.0, %v906
        %v908 = vpop.f32.mrb[0].mxu0
        %v909 = vadd.f32 0.0, %v908
        %910 = vmatprep.mubr.bf16.mxu0 0
        %911 = vmatmul.mubr.bf16.gmra.mrb[0].mxu0 %v711
        %v912 = vpop.f32.mrb[0].mxu0
        %v913 = vadd.f32 0.0, %v912
        %v914 = vpop.f32.mrb[0].mxu0
        %v915 = vadd.f32 0.0, %v914
        %v916 = vpop.f32.mrb[0].mxu0
        %v917 = vadd.f32 0.0, %v916
        %v918 = vpop.f32.mrb[0].mxu0
        %v919 = vadd.f32 0.0, %v918
        %920 = vdwg.mxu0
        %v921 = vpack.c.bf16 %v767, %v763
        %v922 = vpack.c.bf16 %v769, %v765
        %v923 = vpack.c.bf16 %v777, %v773
        %v924 = vpack.c.bf16 %v779, %v775
        %v925 = vpack.c.bf16 %v787, %v783
        %v926 = vpack.c.bf16 %v789, %v785
        %v927 = vpack.c.bf16 %v797, %v793
        %v928 = vpack.c.bf16 %v799, %v795
        %v929 = vpack.c.bf16 %v807, %v803
        %v930 = vpack.c.bf16 %v809, %v805
        %v931 = vpack.c.bf16 %v817, %v813
        %v932 = vpack.c.bf16 %v819, %v815
        %v933 = vpack.c.bf16 %v827, %v823
        %v934 = vpack.c.bf16 %v829, %v825
        %v935 = vpack.c.bf16 %v837, %v833
        %v936 = vpack.c.bf16 %v839, %v835
        %v937 = vpack.c.bf16 %v847, %v843
        %v938 = vpack.c.bf16 %v849, %v845
        %v939 = vpack.c.bf16 %v857, %v853
        %v940 = vpack.c.bf16 %v859, %v855
        %v941 = vpack.c.bf16 %v867, %v863
        %v942 = vpack.c.bf16 %v869, %v865
        %v943 = vpack.c.bf16 %v877, %v873
        %v944 = vpack.c.bf16 %v879, %v875
        %v945 = vpack.c.bf16 %v887, %v883
        %v946 = vpack.c.bf16 %v889, %v885
        %v947 = vpack.c.bf16 %v897, %v893
        %v948 = vpack.c.bf16 %v899, %v895
        %v949 = vpack.c.bf16 %v907, %v903
        %v950 = vpack.c.bf16 %v909, %v905
        %v951 = vpack.c.bf16 %v917, %v913
        %v952 = vpack.c.bf16 %v919, %v915
        %v953 = vld [vmem:[%s4] sm:$0xff]
        %v954 = vld [vmem:[%s4 + $0x8] sm:$0xff]
        %v955 = vld [vmem:[%s4 + $0x10] sm:$0xff]
        %v956 = vld [vmem:[%s4 + $0x18] sm:$0xff]
        %v957 = vld [vmem:[%s4 + $0x20] sm:$0xff]
        %v958 = vld [vmem:[%s4 + $0x28] sm:$0xff]
        %v959 = vld [vmem:[%s4 + $0x30] sm:$0xff]
        %v960 = vld [vmem:[%s4 + $0x38] sm:$0xff]
        %v961 = vld [vmem:[%s4 + $0x40] sm:$0xff]
        %v962 = vld [vmem:[%s4 + $0x48] sm:$0xff]
        %v963 = vld [vmem:[%s4 + $0x50] sm:$0xff]
        %v964 = vld [vmem:[%s4 + $0x58] sm:$0xff]
        %v965 = vld [vmem:[%s4 + $0x60] sm:$0xff]
        %v966 = vld [vmem:[%s4 + $0x68] sm:$0xff]
        %v967 = vld [vmem:[%s4 + $0x70] sm:$0xff]
        %v968 = vld [vmem:[%s4 + $0x78] sm:$0xff]
        %v969 = vld [vmem:[%s4 + $0x80] sm:$0xff]
        %v970 = vld [vmem:[%s4 + $0x88] sm:$0xff]
        %v971 = vld [vmem:[%s4 + $0x90] sm:$0xff]
        %v972 = vld [vmem:[%s4 + $0x98] sm:$0xff]
        %v973 = vld [vmem:[%s4 + $0xa0] sm:$0xff]
        %v974 = vld [vmem:[%s4 + $0xa8] sm:$0xff]
        %v975 = vld [vmem:[%s4 + $0xb0] sm:$0xff]
        %v976 = vld [vmem:[%s4 + $0xb8] sm:$0xff]
        %v977 = vld [vmem:[%s4 + $0xc0] sm:$0xff]
        %v978 = vld [vmem:[%s4 + $0xc8] sm:$0xff]
        %v979 = vld [vmem:[%s4 + $0xd0] sm:$0xff]
        %v980 = vld [vmem:[%s4 + $0xd8] sm:$0xff]
        %v981 = vld [vmem:[%s4 + $0xe0] sm:$0xff]
        %v982 = vld [vmem:[%s4 + $0xe8] sm:$0xff]
        %v983 = vld [vmem:[%s4 + $0xf0] sm:$0xff]
        %v984 = vld [vmem:[%s4 + $0xf8] sm:$0xff]
        %v985 = vpack.c.bf16 %v954, %v953
        %v986 = vpack.c.bf16 %v956, %v955
        %v987 = vpack.c.bf16 %v958, %v957
        %v988 = vpack.c.bf16 %v960, %v959
        %v989 = vpack.c.bf16 %v962, %v961
        %v990 = vpack.c.bf16 %v964, %v963
        %v991 = vpack.c.bf16 %v966, %v965
        %v992 = vpack.c.bf16 %v968, %v967
        %v993 = vpack.c.bf16 %v970, %v969
        %v994 = vpack.c.bf16 %v972, %v971
        %v995 = vpack.c.bf16 %v974, %v973
        %v996 = vpack.c.bf16 %v976, %v975
        %v997 = vpack.c.bf16 %v978, %v977
        %v998 = vpack.c.bf16 %v980, %v979
        %v999 = vpack.c.bf16 %v982, %v981
        %v1000 = vpack.c.bf16 %v984, %v983
        %1002 = vset.pattern.permute.xlu0 0
        %1003 = vperm.xlu0 %1002, %v985
        %v1004 = vpop.permute.xlu0 %1003
        %1007 = vset.pattern.permute.xlu0 0
        %1008 = vperm.xlu0 %1007, %v986
        %v1009 = vpop.permute.xlu0 %1008
        %1012 = vset.pattern.permute.xlu0 0
        %1013 = vperm.xlu0 %1012, %v987
        %v1014 = vpop.permute.xlu0 %1013
        %1017 = vset.pattern.permute.xlu0 0
        %1018 = vperm.xlu0 %1017, %v988
        %v1019 = vpop.permute.xlu0 %1018
        %1022 = vset.pattern.permute.xlu0 0
        %1023 = vperm.xlu0 %1022, %v989
        %v1024 = vpop.permute.xlu0 %1023
        %1027 = vset.pattern.permute.xlu0 0
        %1028 = vperm.xlu0 %1027, %v990
        %v1029 = vpop.permute.xlu0 %1028
        %1032 = vset.pattern.permute.xlu0 0
        %1033 = vperm.xlu0 %1032, %v991
        %v1034 = vpop.permute.xlu0 %1033
        %1037 = vset.pattern.permute.xlu0 0
        %1038 = vperm.xlu0 %1037, %v992
        %v1039 = vpop.permute.xlu0 %1038
        %1042 = vset.pattern.permute.xlu0 0
        %1043 = vperm.xlu0 %1042, %v993
        %v1044 = vpop.permute.xlu0 %1043
        %1047 = vset.pattern.permute.xlu0 0
        %1048 = vperm.xlu0 %1047, %v994
        %v1049 = vpop.permute.xlu0 %1048
        %1052 = vset.pattern.permute.xlu0 0
        %1053 = vperm.xlu0 %1052, %v995
        %v1054 = vpop.permute.xlu0 %1053
        %1057 = vset.pattern.permute.xlu0 0
        %1058 = vperm.xlu0 %1057, %v996
        %v1059 = vpop.permute.xlu0 %1058
        %1062 = vset.pattern.permute.xlu0 0
        %1063 = vperm.xlu0 %1062, %v997
        %v1064 = vpop.permute.xlu0 %1063
        %1067 = vset.pattern.permute.xlu0 0
        %1068 = vperm.xlu0 %1067, %v998
        %v1069 = vpop.permute.xlu0 %1068
        %1072 = vset.pattern.permute.xlu0 0
        %1073 = vperm.xlu0 %1072, %v999
        %v1074 = vpop.permute.xlu0 %1073
        %1077 = vset.pattern.permute.xlu0 0
        %1078 = vperm.xlu0 %1077, %v1000
        %v1079 = vpop.permute.xlu0 %1078
        %v1081 = vadd.bf16 %v921, %v1004
        %v1082 = vadd.bf16 %v922, %v1004
        %v1083 = vadd.bf16 %v923, %v1009
        %v1084 = vadd.bf16 %v924, %v1009
        %v1085 = vadd.bf16 %v925, %v1014
        %v1086 = vadd.bf16 %v926, %v1014
        %v1087 = vadd.bf16 %v927, %v1019
        %v1088 = vadd.bf16 %v928, %v1019
        %v1089 = vadd.bf16 %v929, %v1024
        %v1090 = vadd.bf16 %v930, %v1024
        %v1091 = vadd.bf16 %v931, %v1029
        %v1092 = vadd.bf16 %v932, %v1029
        %v1093 = vadd.bf16 %v933, %v1034
        %v1094 = vadd.bf16 %v934, %v1034
        %v1095 = vadd.bf16 %v935, %v1039
        %v1096 = vadd.bf16 %v936, %v1039
        %v1097 = vadd.bf16 %v937, %v1044
        %v1098 = vadd.bf16 %v938, %v1044
        %v1099 = vadd.bf16 %v939, %v1049
        %v1100 = vadd.bf16 %v940, %v1049
        %v1101 = vadd.bf16 %v941, %v1054
        %v1102 = vadd.bf16 %v942, %v1054
        %v1103 = vadd.bf16 %v943, %v1059
        %v1104 = vadd.bf16 %v944, %v1059
        %v1105 = vadd.bf16 %v945, %v1064
        %v1106 = vadd.bf16 %v946, %v1064
        %v1107 = vadd.bf16 %v947, %v1069
        %v1108 = vadd.bf16 %v948, %v1069
        %v1109 = vadd.bf16 %v949, %v1074
        %v1110 = vadd.bf16 %v950, %v1074
        %v1111 = vadd.bf16 %v951, %v1079
        %v1112 = vadd.bf16 %v952, %v1079
        %v1113 = vmax.bf16 %v1081, 0
        %v1114 = vmax.bf16 %v1082, 0
        %v1115 = vmax.bf16 %v1083, 0
        %v1116 = vmax.bf16 %v1084, 0
        %v1117 = vmax.bf16 %v1085, 0
        %v1118 = vmax.bf16 %v1086, 0
        %v1119 = vmax.bf16 %v1087, 0
        %v1120 = vmax.bf16 %v1088, 0
        %v1121 = vmax.bf16 %v1089, 0
        %v1122 = vmax.bf16 %v1090, 0
        %v1123 = vmax.bf16 %v1091, 0
        %v1124 = vmax.bf16 %v1092, 0
        %v1125 = vmax.bf16 %v1093, 0
        %v1126 = vmax.bf16 %v1094, 0
        %v1127 = vmax.bf16 %v1095, 0
        %v1128 = vmax.bf16 %v1096, 0
        %v1129 = vmax.bf16 %v1097, 0
        %v1130 = vmax.bf16 %v1098, 0
        %v1131 = vmax.bf16 %v1099, 0
        %v1132 = vmax.bf16 %v1100, 0
        %v1133 = vmax.bf16 %v1101, 0
        %v1134 = vmax.bf16 %v1102, 0
        %v1135 = vmax.bf16 %v1103, 0
        %v1136 = vmax.bf16 %v1104, 0
        %v1137 = vmax.bf16 %v1105, 0
        %v1138 = vmax.bf16 %v1106, 0
        %v1139 = vmax.bf16 %v1107, 0
        %v1140 = vmax.bf16 %v1108, 0
        %v1141 = vmax.bf16 %v1109, 0
        %v1142 = vmax.bf16 %v1110, 0
        %v1143 = vmax.bf16 %v1111, 0
        %v1144 = vmax.bf16 %v1112, 0
        %v1145 = vld [vmem:[%s5] sm:$0xff]
        %v1146 = vld [vmem:[%s6] sm:$0xff]
        %1148 = vset.pattern.permute.xlu0 0
        %1149 = vperm.xlu0 %1148, %v1146
        %v1150 = vpop.permute.xlu0 %1149
        %v1153 = vunpack.c.l.b16 %v1145
        %v1154 = vunpack.c.h.b16 %v1145
        %v1155 = vpack.c.b16 %v1153, %v1153
        %v1156 = vpack.c.b16 %v1154, %v1154
        %1159 = vmatprep.subr.bf16.mxu0 %v1114
        %1160 = vmatpush1.bf16.msra.mxu0 %v1113
        %1161 = vmatprep.subr.bf16.mxu0 %v1116
        %1162 = vmatpush1.bf16.msra.mxu0 %v1115
        %1163 = vmatprep.subr.bf16.mxu0 %v1118
        %1164 = vmatpush1.bf16.msra.mxu0 %v1117
        %1165 = vmatprep.subr.bf16.mxu0 %v1120
        %1166 = vmatpush1.bf16.msra.mxu0 %v1119
        %1167 = vmatprep.subr.bf16.mxu0 %v1122
        %1168 = vmatpush1.bf16.msra.mxu0 %v1121
        %1169 = vmatprep.subr.bf16.mxu0 %v1124
        %1170 = vmatpush1.bf16.msra.mxu0 %v1123
        %1171 = vmatprep.subr.bf16.mxu0 %v1126
        %1172 = vmatpush1.bf16.msra.mxu0 %v1125
        %1173 = vmatprep.subr.bf16.mxu0 %v1128
        %1174 = vmatpush1.bf16.msra.mxu0 %v1127
        %1175 = vmatprep.subr.bf16.mxu0 %v1130
        %1176 = vmatpush1.bf16.msra.mxu0 %v1129
        %1177 = vmatprep.subr.bf16.mxu0 %v1132
        %1178 = vmatpush1.bf16.msra.mxu0 %v1131
        %1179 = vmatprep.subr.bf16.mxu0 %v1134
        %1180 = vmatpush1.bf16.msra.mxu0 %v1133
        %1181 = vmatprep.subr.bf16.mxu0 %v1136
        %1182 = vmatpush1.bf16.msra.mxu0 %v1135
        %1183 = vmatprep.subr.bf16.mxu0 %v1138
        %1184 = vmatpush1.bf16.msra.mxu0 %v1137
        %1185 = vmatprep.subr.bf16.mxu0 %v1140
        %1186 = vmatpush1.bf16.msra.mxu0 %v1139
        %1187 = vmatprep.subr.bf16.mxu0 %v1142
        %1188 = vmatpush1.bf16.msra.mxu0 %v1141
        %1189 = vmatprep.subr.bf16.mxu0 %v1144
        %1190 = vmatpush1.bf16.msra.mxu0 %v1143
        %1191 = vmatprep.mubr.bf16.mxu0 %v1156
        %1192 = vmatmul.mubr.bf16.gmra.mrb[0].mxu0 %v1155
        %v1193 = vpop.f32.mrb[0].mxu0
        %v1194 = vadd.f32 %v1150, %v1193
        %v1195 = vpop.f32.mrb[0].mxu0
        %v1196 = vadd.f32 %v1150, %v1195
        %v1197 = vpop.f32.mrb[0].mxu0
        %v1198 = vpop.f32.mrb[0].mxu0
        %1199 = vdwg.mxu0
        %1200 = vst [vmem:[%s272] sm:$0xff] %v1194
        %1201 = vst [vmem:[%s272 + $0x8] sm:$0xff] %v1196
        %s1202 = sand.u32 %s181, 1
        %s1203 = scalar_lea.sflag [#allocation3], %s1202
        %s1204 = sand.u32 %s181, 1
        %s1205 = smul.addr %s1204, 16
        %s1206 = scalar_lea.vmem [#allocation2], %s1205
        // Predicated region
        $region49: #{tpu_custom_call.1} parent=47 // pred_check
          %p1207 = pneg %p191
        $region50: #{tpu_custom_call.1} parent=47 // pred_check_branch
          %1209 = sbr.rel (%p1207) target = $region52
        $region51: #{tpu_custom_call.1} parent=47 // pred_region
          %s1210 = smul.u32 2, %s21
          %s1212 = ssub.s32 256, 256
          %1213 = vsyncadd %s1203, %s1212
          %s1214 = smul.addr %s1210, 128
          %s1215 = scalar_lea.hbm %s7, %s1214
          %s1217 = sshll.u32 %s1206, 4
          %s1218 = int_to_ptr.vmem [resolvable:$true] %s1217
          %1220 = dma.vmem_to_hbm [thread:$0]  %s1218, 256, %s1215, %s1203
        $region52: #{tpu_custom_call.1} parent=47 // pred_fallthru
          _
      $region48: #{tpu_custom_call.1} parent=5 // pred_fallthru
        _
      %p1221 = scmp.le.s32.totalorder 2, %s16
      // Predicated region
      $region53: #{tpu_custom_call.1} parent=5 // pred_check
        %p1222 = pneg %p1221
      $region54: #{tpu_custom_call.1} parent=5 // pred_check_branch
        %1224 = sbr.rel (%p1222) target = $region56
      $region55: #{tpu_custom_call.1} parent=5 // pred_region
        %s1225 = ssub.s32 %s16, 2
        // Predicated region
        $region57: #{tpu_custom_call.1} parent=55 // pred_check
          %p1226 = pneg %p197
        $region58: #{tpu_custom_call.1} parent=55 // pred_check_branch
          %1228 = sbr.rel (%p1226) target = $region60
        $region59: #{tpu_custom_call.1} parent=55 // pred_region
          %s1229 = sand.u32 %s182, 1
          %s1230 = scalar_lea.sflag [#allocation3], %s1229
          %s1231 = sand.u32 %s182, 1
          %s1232 = smul.addr %s1231, 16
          %s1233 = scalar_lea.vmem [#allocation2], %s1232
          %1234 = dma.done %s1230, 256
        $region60: #{tpu_custom_call.1} parent=55 // pred_fallthru
          _
      $region56: #{tpu_custom_call.1} parent=5 // pred_fallthru
        _
    $region6: #{tpu_custom_call.1} parent=1 // loop_footer
      %s20 = sadd.s32 1, %s16
    $region7: #{tpu_custom_call.1} parent=1 // loop_footer_branch
      %15 = sbr.rel target = $region3
    $region8: #{tpu_custom_call.1} parent=1 // loop_exit
      _
    %1235 = vsyncpa [#allocation3], 1
    %s1236 = scalar_lea.sflag [#allocation3], 1
    %1237 = vsyncpa %s1236, 1

</llo_original>
